<compile_context>
chip_gen: v6e
topology: v6e:2x2x1
jax: 0.10.0
libtpu: 0.0.40
codegen_flags: <defaults>
</compile_context>

<pallas_src>
import math
from functools import partial

import jax
import jax.numpy as jnp
from jax.experimental import pallas as pl
from jax.experimental.pallas import tpu as pltpu

_LOG2PI = math.log(2.0 * math.pi)
_LEAKY_SLOPE = 0.01  # nn.LeakyReLU default negative_slope


def _leaky_relu(x):
    # Identical to where(x > 0, x, slope*x) for slope in (0, 1); cheaper on the VPU.
    return jnp.maximum(x, _LEAKY_SLOPE * x)


def _round_up(n, m):
    return ((n + m - 1) // m) * m


def _pad2(a, shape):
    pads = [(0, s - d) for d, s in zip(a.shape, shape)]
    if any(p[1] for p in pads):
        a = jnp.pad(a, pads)
    return a


# -----------------------------------------------------------------------------
# Kernel
# -----------------------------------------------------------------------------
def encoder_logprob_kernel(x_ref, w1_ref, b1_ref, w2_ref, b2_ref,
                           w3_ref, b3_ref, eps_ref, out_ref, *, m_pad):
    # --- encoder_net MLP: bf16 operands on the MXU, f32 accumulation ---
    x = x_ref[...].astype(jnp.bfloat16)  # in-kernel cast: no extra HBM pass in the wrapper
    h1 = jnp.dot(x, w1_ref[...], preferred_element_type=jnp.float32) + b1_ref[...]
    h1 = _leaky_relu(h1).astype(jnp.bfloat16)
    h2 = jnp.dot(h1, w2_ref[...], preferred_element_type=jnp.float32) + b2_ref[...]
    h2 = _leaky_relu(h2).astype(jnp.bfloat16)

    # --- fused mu|log_var head: one 2*M_p-lane matmul, static 128-aligned slices ---
    h3 = jnp.dot(h2, w3_ref[...], preferred_element_type=jnp.float32) + b3_ref[...]
    mu = h3[:, :m_pad]
    log_var = h3[:, m_pad:]

    # --- reparameterization: z = mu + exp(0.5*log_var) * eps ---
    eps = eps_ref[...]
    z = mu + jnp.exp(0.5 * log_var) * eps

    # --- log_normal_diag(z, mu, log_var), reduction=None ---
    # exp(-log_var) * (z - mu)**2 == eps**2 exactly.
    logp = -0.5 * (jnp.float32(_LOG2PI) + log_var + eps * eps)

    # Fused lane-dense output block: [ logp | z ].
    out_ref[:, :m_pad] = logp
    out_ref[:, m_pad:] = z


# -----------------------------------------------------------------------------
# Wrapper
# -----------------------------------------------------------------------------
def _choose_batch_tile(B):
    """Batch tile:
       - B <= 128: single grid step (tiny shapes are launch/DMA-overhead bound anyway).
       - B  > 128: biggest 128-multiple tile <= 512 that still yields >= 2 grid steps,
         so the "parallel" batch axis can be sharded across both v7x TensorCores."""
    if B <= 128:
        return _round_up(B, 8)
    half = _round_up((B + 1) // 2, 128)
    return min(512, half)


def _vmem_limit_bytes(TB, D_p, H_p, M_p):
    # Worst case: x counted at 4 B/elem, everything double-buffered.
    act = TB * D_p * 4 + TB * M_p * 4 + TB * 2 * M_p * 4
    wts = (D_p * H_p + H_p * H_p + H_p * 2 * M_p) * 2 + (2 * H_p + 2 * M_p) * 4
    total = 2 * (act + wts)
    # Raise above v5e's 16 MiB default when needed; cap below v7x's 64 MiB physical.
    return int(min(max(total + (8 << 20), 32 << 20), 48 << 20))


def _build_call(TB, D_p, H_p, M_p, grid, single_buffer_weights):
    def row_spec(last):
        return pl.BlockSpec((TB, last), lambda i: (i, 0))

    def const_spec(shape):
        if single_buffer_weights:
            # Grid-invariant block: a second pipeline buffer would be pure VMEM waste.
            return pl.BlockSpec(shape, lambda i: (0, 0), pipeline_mode=pl.Buffered(1))
        return pl.BlockSpec(shape, lambda i: (0, 0))

    B_p = TB * grid[0]
    return pl.pallas_call(
        partial(encoder_logprob_kernel, m_pad=M_p),
        grid=grid,
        out_shape=jax.ShapeDtypeStruct((B_p, 2 * M_p), jnp.float32),
        in_specs=[
            row_spec(D_p),                # x        (batch-tiled)
            const_spec((D_p, H_p)),       # w1       (resident)
            const_spec((1, H_p)),         # b1
            const_spec((H_p, H_p)),       # w2
            const_spec((1, H_p)),         # b2
            const_spec((H_p, 2 * M_p)),   # w3 = [w_mu | w_logvar]
            const_spec((1, 2 * M_p)),     # b3 = [b_mu | b_logvar]
            row_spec(M_p),                # eps      (batch-tiled)
        ],
        out_specs=row_spec(2 * M_p),      # [logp | z]
        compiler_params=pltpu.CompilerParams(
            dimension_semantics=("parallel",),
            vmem_limit_bytes=_vmem_limit_bytes(TB, D_p, H_p, M_p),
        ),
    )


def encoder_log_prob(x, params, eps):
    """Runs Encoder.forward(x, type='log_prob'). Returns (log_p, z), each (B, M)."""
    w1, b1, w2, b2, w3, b3 = params
    B, D = x.shape
    H = w1.shape[1]
    M = w3.shape[1] // 2

    D_p = _round_up(D, 128)
    H_p = _round_up(H, 128)
    M_p = _round_up(M, 128)
    TB = _choose_batch_tile(B)
    B_p = _round_up(B, TB)
    grid = (B_p // TB,)

    # Pad/cast activations only when strictly required (skips the extra HBM pass).
    if (B_p, D_p) == (B, D):
        x_in = x  # native f32; cast to bf16 inside the kernel
    else:
        # The padding pass materializes x anyway; emit it directly in bf16 so the
        # kernel-side DMA moves half the bytes.
        x_in = _pad2(x, (B_p, D_p)).astype(jnp.bfloat16)
    eps_in = eps if (B_p, M_p) == (B, M) else _pad2(eps, (B_p, M_p))
    if eps_in.dtype != jnp.float32:
        eps_in = eps_in.astype(jnp.float32)

    # Fused head: pad each half of the (H, 2M) projection to M_p lanes, concatenate.
    # Zero-padding keeps the math exact; padded columns are sliced off below.
    w_mu, w_lv = w3[:, :M], w3[:, M:]
    b_mu, b_lv = b3[:, :M], b3[:, M:]
    w3_p = jnp.concatenate(
        [_pad2(w_mu, (H_p, M_p)), _pad2(w_lv, (H_p, M_p))], axis=1
    ).astype(jnp.bfloat16)
    b3_p = jnp.concatenate(
        [_pad2(b_mu, (1, M_p)), _pad2(b_lv, (1, M_p))], axis=1
    ).astype(jnp.float32)
    w1_p = _pad2(w1, (D_p, H_p)).astype(jnp.bfloat16)
    w2_p = _pad2(w2, (H_p, H_p)).astype(jnp.bfloat16)
    b1_p = _pad2(b1, (1, H_p)).astype(jnp.float32)
    b2_p = _pad2(b2, (1, H_p)).astype(jnp.float32)

    args = (x_in, w1_p, b1_p, w2_p, b2_p, w3_p, b3_p, eps_in)

    try:
        out = _build_call(TB, D_p, H_p, M_p, grid, single_buffer_weights=True)(*args)
    except Exception:
        # Fallback if pipeline_mode=pl.Buffered(1) is rejected by this JAX build:
        # identical kernel, default (double-buffered) weight BlockSpecs.
        out = _build_call(TB, D_p, H_p, M_p, grid, single_buffer_weights=False)(*args)

    log_p = out[:B, :M]
    z = out[:B, M_p:M_p + M]
    return log_p, z


# -----------------------------------------------------------------------------
# Parameter init + pure-JAX reference
# -----------------------------------------------------------------------------
def init_params(key, d_in, hidden, latent):
    """Deterministic parameter init (shapes follow the standard VAE encoder MLP)."""
    ks = jax.random.split(key, 6)

    def lin(kw, kb, fan_in, fan_out):
        bound = 1.0 / math.sqrt(fan_in)
        w = jax.random.uniform(kw, (fan_in, fan_out), jnp.float32, -bound, bound)
        b = jax.random.uniform(kb, (1, fan_out), jnp.float32, -bound, bound)
        return w, b

    w1, b1 = lin(ks[0], ks[1], d_in, hidden)
    w2, b2 = lin(ks[2], ks[3], hidden, hidden)
    w3, b3 = lin(ks[4], ks[5], hidden, 2 * latent)
    return (w1, b1, w2, b2, w3, b3)


def reference_log_prob(x, params, eps, matmul_dtype=jnp.float32):
    """Pure-JAX reference. matmul_dtype=bf16 mirrors the kernel's MXU precision."""
    w1, b1, w2, b2, w3, b3 = params

    def mm(a, w):
        return jnp.dot(a.astype(matmul_dtype), w.astype(matmul_dtype),
                       preferred_element_type=jnp.float32)

    h = _leaky_relu(mm(x, w1) + b1)
    h = _leaky_relu(mm(h, w2) + b2)
    h = mm(h, w3) + b3
    M = w3.shape[1] // 2
    mu, log_var = h[:, :M], h[:, M:]
    z = mu + jnp.exp(0.5 * log_var) * eps
    logp = (-0.5 * _LOG2PI
            - 0.5 * log_var
            - 0.5 * jnp.exp(-log_var) * (z - mu) ** 2)
    return logp, z


if __name__ == "__main__":
    key = jax.random.PRNGKey(0)
    k_x, k_p, k_eps, k2_x, k2_eps = jax.random.split(key, 5)

    # --- Small demo shape (padded feature dims, single grid step) ---
    B, D, H, M = 8, 64, 128, 16
    x = jax.random.normal(k_x, (B, D), jnp.float32)
    params = init_params(k_p, D, H, M)
    # torch.randn_like(std): Gaussian noise generated outside the kernel and passed in.
    eps = jax.random.normal(k_eps, (B, M), jnp.float32)

    logp, z = encoder_log_prob(x, params, eps)
    jax.block_until_ready((logp, z))
    assert logp.shape == (B, M) and z.shape == (B, M)

    # Tight check against a reference using the same bf16-operand / f32-accum matmuls.
    logp_bf, z_bf = reference_log_prob(x, params, eps, matmul_dtype=jnp.bfloat16)
    assert jnp.allclose(logp, logp_bf, atol=1e-2, rtol=1e-2)
    assert jnp.allclose(z, z_bf, atol=1e-2, rtol=1e-2)

    # Looser sanity check against the full-f32 reference (bf16 operand quantization).
    logp_f32, z_f32 = reference_log_prob(x, params, eps)
    assert jnp.allclose(logp, logp_f32, atol=1e-1, rtol=1e-1)
    assert jnp.allclose(z, z_f32, atol=1e-1, rtol=1e-1)

    # --- Lane-aligned shape with a 2-step parallel grid (no wrapper pad/cast path) ---
    B2, D2, H2, M2 = 256, 128, 128, 128
    x2 = jax.random.normal(k2_x, (B2, D2), jnp.float32)
    params2 = init_params(jax.random.PRNGKey(1), D2, H2, M2)
    eps2 = jax.random.normal(k2_eps, (B2, M2), jnp.float32)

    logp2, z2 = encoder_log_prob(x2, params2, eps2)
    jax.block_until_ready((logp2, z2))
    assert logp2.shape == (B2, M2) and z2.shape == (B2, M2)
    logp2_bf, z2_bf = reference_log_prob(x2, params2, eps2, matmul_dtype=jnp.bfloat16)
    assert jnp.allclose(logp2, logp2_bf, atol=1e-2, rtol=1e-2)
    assert jnp.allclose(z2, z2_bf, atol=1e-2, rtol=1e-2)

    print("KERNEL_OK")
</pallas_src>

<mosaic_0001>
module attributes {stable_mosaic.version = 11 : i64} {
  func.func @encoder_logprob_kernel(%arg0: i32, %arg1: memref<8x128xbf16, #tpu.memory_space<vmem>>, %arg2: memref<128x128xbf16, #tpu.memory_space<vmem>>, %arg3: memref<1x128xf32, #tpu.memory_space<vmem>>, %arg4: memref<128x128xbf16, #tpu.memory_space<vmem>>, %arg5: memref<1x128xf32, #tpu.memory_space<vmem>>, %arg6: memref<128x256xbf16, #tpu.memory_space<vmem>>, %arg7: memref<1x256xf32, #tpu.memory_space<vmem>>, %arg8: memref<8x128xf32, #tpu.memory_space<vmem>>, %arg9: memref<8x256xf32, #tpu.memory_space<vmem>>) attributes {dimension_semantics = [#tpu.dimension_semantics<parallel>], iteration_bounds = array<i64: 1>, scalar_prefetch = 0 : i64, scratch_operands = 0 : i64, tpu.core_type = #tpu.core_type<tc>, window_params = [{transform_indices = @transform_0, window_bounds = array<i64: 8, 128>}, {pipeline_mode = #tpu.pipeline_mode<synchronous>, transform_indices = @transform_1, window_bounds = array<i64: 128, 128>}, {pipeline_mode = #tpu.pipeline_mode<synchronous>, transform_indices = @transform_2, window_bounds = array<i64: 1, 128>}, {pipeline_mode = #tpu.pipeline_mode<synchronous>, transform_indices = @transform_3, window_bounds = array<i64: 128, 128>}, {pipeline_mode = #tpu.pipeline_mode<synchronous>, transform_indices = @transform_4, window_bounds = array<i64: 1, 128>}, {pipeline_mode = #tpu.pipeline_mode<synchronous>, transform_indices = @transform_5, window_bounds = array<i64: 128, 256>}, {pipeline_mode = #tpu.pipeline_mode<synchronous>, transform_indices = @transform_6, window_bounds = array<i64: 1, 256>}, {transform_indices = @transform_7, window_bounds = array<i64: 8, 128>}, {transform_indices = @transform_8, window_bounds = array<i64: 8, 256>}]} {
    %c0 = arith.constant 0 : index
    %c0_0 = arith.constant 0 : index
    %0 = vector.load %arg1[%c0, %c0_0] : memref<8x128xbf16, #tpu.memory_space<vmem>>, vector<8x128xbf16>
    %c0_1 = arith.constant 0 : index
    %c0_2 = arith.constant 0 : index
    %1 = vector.load %arg2[%c0_1, %c0_2] : memref<128x128xbf16, #tpu.memory_space<vmem>>, vector<128x128xbf16>
    %cst = arith.constant dense<0.000000e+00> : vector<8x128xf32>
    %2 = tpu.matmul %0, %1, %cst {dimension_numbers = #tpu.dot_dimension_numbers<[1], [0], [0], [1], [0, 0, 1, 1], [], []>} : vector<8x128xbf16>, vector<128x128xbf16>, vector<8x128xf32> -> vector<8x128xf32>
    %c0_3 = arith.constant 0 : index
    %c0_4 = arith.constant 0 : index
    %3 = vector.load %arg3[%c0_3, %c0_4] : memref<1x128xf32, #tpu.memory_space<vmem>>, vector<1x128xf32>
    %4 = vector.broadcast %3 : vector<1x128xf32> to vector<8x128xf32>
    %5 = arith.addf %2, %4 : vector<8x128xf32>
    %cst_5 = arith.constant 0.00999999977 : f32
    %6 = vector.broadcast %cst_5 : f32 to vector<8x128xf32>
    %7 = arith.mulf %6, %5 : vector<8x128xf32>
    %8 = arith.maximumf %5, %7 : vector<8x128xf32>
    %9 = arith.truncf %8 : vector<8x128xf32> to vector<8x128xbf16>
    %c0_6 = arith.constant 0 : index
    %c0_7 = arith.constant 0 : index
    %10 = vector.load %arg4[%c0_6, %c0_7] : memref<128x128xbf16, #tpu.memory_space<vmem>>, vector<128x128xbf16>
    %cst_8 = arith.constant dense<0.000000e+00> : vector<8x128xf32>
    %11 = tpu.matmul %9, %10, %cst_8 {dimension_numbers = #tpu.dot_dimension_numbers<[1], [0], [0], [1], [0, 0, 1, 1], [], []>} : vector<8x128xbf16>, vector<128x128xbf16>, vector<8x128xf32> -> vector<8x128xf32>
    %c0_9 = arith.constant 0 : index
    %c0_10 = arith.constant 0 : index
    %12 = vector.load %arg5[%c0_9, %c0_10] : memref<1x128xf32, #tpu.memory_space<vmem>>, vector<1x128xf32>
    %13 = vector.broadcast %12 : vector<1x128xf32> to vector<8x128xf32>
    %14 = arith.addf %11, %13 : vector<8x128xf32>
    %cst_11 = arith.constant 0.00999999977 : f32
    %15 = vector.broadcast %cst_11 : f32 to vector<8x128xf32>
    %16 = arith.mulf %15, %14 : vector<8x128xf32>
    %17 = arith.maximumf %14, %16 : vector<8x128xf32>
    %18 = arith.truncf %17 : vector<8x128xf32> to vector<8x128xbf16>
    %c0_12 = arith.constant 0 : index
    %c0_13 = arith.constant 0 : index
    %19 = vector.load %arg6[%c0_12, %c0_13] : memref<128x256xbf16, #tpu.memory_space<vmem>>, vector<128x256xbf16>
    %cst_14 = arith.constant dense<0.000000e+00> : vector<8x256xf32>
    %20 = tpu.matmul %18, %19, %cst_14 {dimension_numbers = #tpu.dot_dimension_numbers<[1], [0], [0], [1], [0, 0, 1, 1], [], []>} : vector<8x128xbf16>, vector<128x256xbf16>, vector<8x256xf32> -> vector<8x256xf32>
    %c0_15 = arith.constant 0 : index
    %c0_16 = arith.constant 0 : index
    %21 = vector.load %arg7[%c0_15, %c0_16] : memref<1x256xf32, #tpu.memory_space<vmem>>, vector<1x256xf32>
    %22 = vector.broadcast %21 : vector<1x256xf32> to vector<8x256xf32>
    %23 = arith.addf %20, %22 : vector<8x256xf32>
    %24 = vector.extract_strided_slice %23 {offsets = [0, 0], sizes = [8, 128], strides = [1, 1]} : vector<8x256xf32> to vector<8x128xf32>
    %25 = vector.extract_strided_slice %23 {offsets = [0, 128], sizes = [8, 128], strides = [1, 1]} : vector<8x256xf32> to vector<8x128xf32>
    %c0_17 = arith.constant 0 : index
    %c0_18 = arith.constant 0 : index
    %26 = vector.load %arg8[%c0_17, %c0_18] : memref<8x128xf32, #tpu.memory_space<vmem>>, vector<8x128xf32>
    %cst_19 = arith.constant 5.000000e-01 : f32
    %27 = vector.broadcast %cst_19 : f32 to vector<8x128xf32>
    %28 = arith.mulf %27, %25 : vector<8x128xf32>
    %29 = math.exp %28 : vector<8x128xf32>
    %30 = arith.mulf %29, %26 : vector<8x128xf32>
    %31 = arith.addf %24, %30 : vector<8x128xf32>
    %cst_20 = arith.constant 1.83787704 : f32
    %32 = vector.broadcast %cst_20 : f32 to vector<8x128xf32>
    %33 = arith.addf %32, %25 : vector<8x128xf32>
    %34 = arith.mulf %26, %26 : vector<8x128xf32>
    %35 = arith.addf %33, %34 : vector<8x128xf32>
    %cst_21 = arith.constant -5.000000e-01 : f32
    %36 = vector.broadcast %cst_21 : f32 to vector<8x128xf32>
    %37 = arith.mulf %36, %35 : vector<8x128xf32>
    %c0_22 = arith.constant 0 : index
    %c0_23 = arith.constant 0 : index
    %38 = vector.load %arg9[%c0_22, %c0_23] : memref<8x256xf32, #tpu.memory_space<vmem>>, vector<8x128xf32>
    tpu.vector_store %arg9[%c0_22, %c0_23], %37 {strides = array<i32>} : memref<8x256xf32, #tpu.memory_space<vmem>>, vector<8x128xf32>,
    %c0_24 = arith.constant 0 : index
    %c128 = arith.constant 128 : index
    %39 = vector.load %arg9[%c0_24, %c128] : memref<8x256xf32, #tpu.memory_space<vmem>>, vector<8x128xf32>
    tpu.vector_store %arg9[%c0_24, %c128], %31 {strides = array<i32>} : memref<8x256xf32, #tpu.memory_space<vmem>>, vector<8x128xf32>,
    return
  }
  func.func @transform_0(%arg0: i32) -> (i32, i32) {
    %c0_i32 = arith.constant 0 : i32
    %c0_i32_0 = arith.constant 0 : i32
    return %arg0, %c0_i32 : i32, i32
  }
  func.func @transform_1(%arg0: i32) -> (i32, i32) {
    %c0_i32 = arith.constant 0 : i32
    %c0_i32_0 = arith.constant 0 : i32
    %c0_i32_1 = arith.constant 0 : i32
    return %c0_i32, %c0_i32_0 : i32, i32
  }
  func.func @transform_2(%arg0: i32) -> (i32, i32) {
    %c0_i32 = arith.constant 0 : i32
    %c0_i32_0 = arith.constant 0 : i32
    %c0_i32_1 = arith.constant 0 : i32
    return %c0_i32, %c0_i32_0 : i32, i32
  }
  func.func @transform_3(%arg0: i32) -> (i32, i32) {
    %c0_i32 = arith.constant 0 : i32
    %c0_i32_0 = arith.constant 0 : i32
    %c0_i32_1 = arith.constant 0 : i32
    return %c0_i32, %c0_i32_0 : i32, i32
  }
  func.func @transform_4(%arg0: i32) -> (i32, i32) {
    %c0_i32 = arith.constant 0 : i32
    %c0_i32_0 = arith.constant 0 : i32
    %c0_i32_1 = arith.constant 0 : i32
    return %c0_i32, %c0_i32_0 : i32, i32
  }
  func.func @transform_5(%arg0: i32) -> (i32, i32) {
    %c0_i32 = arith.constant 0 : i32
    %c0_i32_0 = arith.constant 0 : i32
    %c0_i32_1 = arith.constant 0 : i32
    return %c0_i32, %c0_i32_0 : i32, i32
  }
  func.func @transform_6(%arg0: i32) -> (i32, i32) {
    %c0_i32 = arith.constant 0 : i32
    %c0_i32_0 = arith.constant 0 : i32
    %c0_i32_1 = arith.constant 0 : i32
    return %c0_i32, %c0_i32_0 : i32, i32
  }
  func.func @transform_7(%arg0: i32) -> (i32, i32) {
    %c0_i32 = arith.constant 0 : i32
    %c0_i32_0 = arith.constant 0 : i32
    return %arg0, %c0_i32 : i32, i32
  }
  func.func @transform_8(%arg0: i32) -> (i32, i32) {
    %c0_i32 = arith.constant 0 : i32
    %c0_i32_0 = arith.constant 0 : i32
    return %arg0, %c0_i32 : i32, i32
  }
}

module attributes {stable_mosaic.version = 11 : i64} {
  func.func @encoder_logprob_kernel(%arg0: i32, %arg1: memref<8x128xbf16, #tpu.memory_space<vmem>>, %arg2: memref<128x128xbf16, #tpu.memory_space<vmem>>, %arg3: memref<1x128xf32, #tpu.memory_space<vmem>>, %arg4: memref<128x128xbf16, #tpu.memory_space<vmem>>, %arg5: memref<1x128xf32, #tpu.memory_space<vmem>>, %arg6: memref<128x256xbf16, #tpu.memory_space<vmem>>, %arg7: memref<1x256xf32, #tpu.memory_space<vmem>>, %arg8: memref<8x128xf32, #tpu.memory_space<vmem>>, %arg9: memref<8x256xf32, #tpu.memory_space<vmem>>) attributes {dimension_semantics = [#tpu.dimension_semantics<parallel>], iteration_bounds = array<i64: 1>, scalar_prefetch = 0 : i64, scratch_operands = 0 : i64, tpu.core_type = #tpu.core_type<tc>, window_params = [{transform_indices = @transform_0, window_bounds = array<i64: 8, 128>}, {pipeline_mode = #tpu.pipeline_mode<synchronous>, transform_indices = @transform_1, window_bounds = array<i64: 128, 128>}, {pipeline_mode = #tpu.pipeline_mode<synchronous>, transform_indices = @transform_2, window_bounds = array<i64: 1, 128>}, {pipeline_mode = #tpu.pipeline_mode<synchronous>, transform_indices = @transform_3, window_bounds = array<i64: 128, 128>}, {pipeline_mode = #tpu.pipeline_mode<synchronous>, transform_indices = @transform_4, window_bounds = array<i64: 1, 128>}, {pipeline_mode = #tpu.pipeline_mode<synchronous>, transform_indices = @transform_5, window_bounds = array<i64: 128, 256>}, {pipeline_mode = #tpu.pipeline_mode<synchronous>, transform_indices = @transform_6, window_bounds = array<i64: 1, 256>}, {transform_indices = @transform_7, window_bounds = array<i64: 8, 128>}, {transform_indices = @transform_8, window_bounds = array<i64: 8, 256>}]} {
    %c0 = arith.constant 0 : index
    %c0_0 = arith.constant 0 : index
    %0 = vector.load %arg1[%c0, %c0_0] : memref<8x128xbf16, #tpu.memory_space<vmem>>, vector<8x128xbf16>
    %c0_1 = arith.constant 0 : index
    %c0_2 = arith.constant 0 : index
    %1 = vector.load %arg2[%c0_1, %c0_2] : memref<128x128xbf16, #tpu.memory_space<vmem>>, vector<128x128xbf16>
    %cst = arith.constant dense<0.000000e+00> : vector<8x128xf32>
    %2 = tpu.matmul %0, %1, %cst {dimension_numbers = #tpu.dot_dimension_numbers<[1], [0], [0], [1], [0, 0, 1, 1], [], []>} : vector<8x128xbf16>, vector<128x128xbf16>, vector<8x128xf32> -> vector<8x128xf32>
    %c0_3 = arith.constant 0 : index
    %c0_4 = arith.constant 0 : index
    %3 = vector.load %arg3[%c0_3, %c0_4] : memref<1x128xf32, #tpu.memory_space<vmem>>, vector<1x128xf32>
    %4 = vector.broadcast %3 : vector<1x128xf32> to vector<8x128xf32>
    %5 = arith.addf %2, %4 : vector<8x128xf32>
    %cst_5 = arith.constant 0.00999999977 : f32
    %6 = vector.broadcast %cst_5 : f32 to vector<8x128xf32>
    %7 = arith.mulf %6, %5 : vector<8x128xf32>
    %8 = arith.maximumf %5, %7 : vector<8x128xf32>
    %9 = arith.truncf %8 : vector<8x128xf32> to vector<8x128xbf16>
    %c0_6 = arith.constant 0 : index
    %c0_7 = arith.constant 0 : index
    %10 = vector.load %arg4[%c0_6, %c0_7] : memref<128x128xbf16, #tpu.memory_space<vmem>>, vector<128x128xbf16>
    %cst_8 = arith.constant dense<0.000000e+00> : vector<8x128xf32>
    %11 = tpu.matmul %9, %10, %cst_8 {dimension_numbers = #tpu.dot_dimension_numbers<[1], [0], [0], [1], [0, 0, 1, 1], [], []>} : vector<8x128xbf16>, vector<128x128xbf16>, vector<8x128xf32> -> vector<8x128xf32>
    %c0_9 = arith.constant 0 : index
    %c0_10 = arith.constant 0 : index
    %12 = vector.load %arg5[%c0_9, %c0_10] : memref<1x128xf32, #tpu.memory_space<vmem>>, vector<1x128xf32>
    %13 = vector.broadcast %12 : vector<1x128xf32> to vector<8x128xf32>
    %14 = arith.addf %11, %13 : vector<8x128xf32>
    %cst_11 = arith.constant 0.00999999977 : f32
    %15 = vector.broadcast %cst_11 : f32 to vector<8x128xf32>
    %16 = arith.mulf %15, %14 : vector<8x128xf32>
    %17 = arith.maximumf %14, %16 : vector<8x128xf32>
    %18 = arith.truncf %17 : vector<8x128xf32> to vector<8x128xbf16>
    %c0_12 = arith.constant 0 : index
    %c0_13 = arith.constant 0 : index
    %19 = vector.load %arg6[%c0_12, %c0_13] : memref<128x256xbf16, #tpu.memory_space<vmem>>, vector<128x256xbf16>
    %cst_14 = arith.constant dense<0.000000e+00> : vector<8x256xf32>
    %20 = tpu.matmul %18, %19, %cst_14 {dimension_numbers = #tpu.dot_dimension_numbers<[1], [0], [0], [1], [0, 0, 1, 1], [], []>} : vector<8x128xbf16>, vector<128x256xbf16>, vector<8x256xf32> -> vector<8x256xf32>
    %c0_15 = arith.constant 0 : index
    %c0_16 = arith.constant 0 : index
    %21 = vector.load %arg7[%c0_15, %c0_16] : memref<1x256xf32, #tpu.memory_space<vmem>>, vector<1x256xf32>
    %22 = vector.broadcast %21 : vector<1x256xf32> to vector<8x256xf32>
    %23 = arith.addf %20, %22 : vector<8x256xf32>
    %24 = vector.extract_strided_slice %23 {offsets = [0, 0], sizes = [8, 128], strides = [1, 1]} : vector<8x256xf32> to vector<8x128xf32>
    %25 = vector.extract_strided_slice %23 {offsets = [0, 128], sizes = [8, 128], strides = [1, 1]} : vector<8x256xf32> to vector<8x128xf32>
    %c0_17 = arith.constant 0 : index
    %c0_18 = arith.constant 0 : index
    %26 = vector.load %arg8[%c0_17, %c0_18] : memref<8x128xf32, #tpu.memory_space<vmem>>, vector<8x128xf32>
    %cst_19 = arith.constant 5.000000e-01 : f32
    %27 = vector.broadcast %cst_19 : f32 to vector<8x128xf32>
    %28 = arith.mulf %27, %25 : vector<8x128xf32>
    %29 = math.exp %28 : vector<8x128xf32>
    %30 = arith.mulf %29, %26 : vector<8x128xf32>
    %31 = arith.addf %24, %30 : vector<8x128xf32>
    %cst_20 = arith.constant 1.83787704 : f32
    %32 = vector.broadcast %cst_20 : f32 to vector<8x128xf32>
    %33 = arith.addf %32, %25 : vector<8x128xf32>
    %34 = arith.mulf %26, %26 : vector<8x128xf32>
    %35 = arith.addf %33, %34 : vector<8x128xf32>
    %cst_21 = arith.constant -5.000000e-01 : f32
    %36 = vector.broadcast %cst_21 : f32 to vector<8x128xf32>
    %37 = arith.mulf %36, %35 : vector<8x128xf32>
    %c0_22 = arith.constant 0 : index
    %c0_23 = arith.constant 0 : index
    %38 = vector.load %arg9[%c0_22, %c0_23] : memref<8x256xf32, #tpu.memory_space<vmem>>, vector<8x128xf32>
    tpu.vector_store %arg9[%c0_22, %c0_23], %37 {strides = array<i32>} : memref<8x256xf32, #tpu.memory_space<vmem>>, vector<8x128xf32>,
    %c0_24 = arith.constant 0 : index
    %c128 = arith.constant 128 : index
    %39 = vector.load %arg9[%c0_24, %c128] : memref<8x256xf32, #tpu.memory_space<vmem>>, vector<8x128xf32>
    tpu.vector_store %arg9[%c0_24, %c128], %31 {strides = array<i32>} : memref<8x256xf32, #tpu.memory_space<vmem>>, vector<8x128xf32>,
    return
  }
  func.func @transform_0(%arg0: i32) -> (i32, i32) {
    %c0_i32 = arith.constant 0 : i32
    %c0_i32_0 = arith.constant 0 : i32
    return %arg0, %c0_i32 : i32, i32
  }
  func.func @transform_1(%arg0: i32) -> (i32, i32) {
    %c0_i32 = arith.constant 0 : i32
    %c0_i32_0 = arith.constant 0 : i32
    %c0_i32_1 = arith.constant 0 : i32
    return %c0_i32, %c0_i32_0 : i32, i32
  }
  func.func @transform_2(%arg0: i32) -> (i32, i32) {
    %c0_i32 = arith.constant 0 : i32
    %c0_i32_0 = arith.constant 0 : i32
    %c0_i32_1 = arith.constant 0 : i32
    return %c0_i32, %c0_i32_0 : i32, i32
  }
  func.func @transform_3(%arg0: i32) -> (i32, i32) {
    %c0_i32 = arith.constant 0 : i32
    %c0_i32_0 = arith.constant 0 : i32
    %c0_i32_1 = arith.constant 0 : i32
    return %c0_i32, %c0_i32_0 : i32, i32
  }
  func.func @transform_4(%arg0: i32) -> (i32, i32) {
    %c0_i32 = arith.constant 0 : i32
    %c0_i32_0 = arith.constant 0 : i32
    %c0_i32_1 = arith.constant 0 : i32
    return %c0_i32, %c0_i32_0 : i32, i32
  }
  func.func @transform_5(%arg0: i32) -> (i32, i32) {
    %c0_i32 = arith.constant 0 : i32
    %c0_i32_0 = arith.constant 0 : i32
    %c0_i32_1 = arith.constant 0 : i32
    return %c0_i32, %c0_i32_0 : i32, i32
  }
  func.func @transform_6(%arg0: i32) -> (i32, i32) {
    %c0_i32 = arith.constant 0 : i32
    %c0_i32_0 = arith.constant 0 : i32
    %c0_i32_1 = arith.constant 0 : i32
    return %c0_i32, %c0_i32_0 : i32, i32
  }
  func.func @transform_7(%arg0: i32) -> (i32, i32) {
    %c0_i32 = arith.constant 0 : i32
    %c0_i32_0 = arith.constant 0 : i32
    return %arg0, %c0_i32 : i32, i32
  }
  func.func @transform_8(%arg0: i32) -> (i32, i32) {
    %c0_i32 = arith.constant 0 : i32
    %c0_i32_0 = arith.constant 0 : i32
    return %arg0, %c0_i32 : i32, i32
  }
}

</mosaic_0001>

<llo_original>
// kernel: tpu_custom_call.1
$region0: #{tpu_custom_call.1}
  #allocation0 [shape = 'u32[]', space=smem, size = 0x4, offset = 0x4, fixed_abs, tag = 'smem constant byte address 0x4 - core index']
  #allocation1 [shape = 'u32[144,128]{1,0:T(1,128)}', space=vmem, size = 0x12000, scoped, tag = 'internal scratch']
  %s0 = inlined_call_operand.hbm [shape: bf16[8,128], index: 0, kind: input, shape index: {}]
  %s1 = inlined_call_operand.hbm [shape: bf16[128,128], index: 1, kind: input, shape index: {}]
  %s2 = inlined_call_operand.vmem [shape: f32[1,128], index: 2, kind: input, shape index: {}]
  %s3 = inlined_call_operand.hbm [shape: bf16[128,128], index: 3, kind: input, shape index: {}]
  %s4 = inlined_call_operand.vmem [shape: f32[1,128], index: 4, kind: input, shape index: {}]
  %s5 = inlined_call_operand.hbm [shape: bf16[128,256], index: 5, kind: input, shape index: {}]
  %s6 = inlined_call_operand.vmem [shape: f32[1,256], index: 6, kind: input, shape index: {}]
  %s7 = inlined_call_operand.vmem [shape: f32[8,128], index: 7, kind: input, shape index: {}]
  %s8 = inlined_call_operand.hbm [shape: f32[8,256], index: 8, kind: output, shape index: {}]
  %s9 = sld [smem:[#allocation0]]
  $region58: #{tpu_custom_call.1} parent=0
    _
  %s11 = ssub.s32 1, %s9
  %s12 = scalar_select 0, %s11, %s9
  $region1: #{tpu_custom_call.1} parent=0
    #allocation2 [shape = 'u8[2048]{0}', space=vmem, size = 0x800, scoped, tag = 'input window, operand 0, single buffered']
    #allocation3 [shape = 's32[1]{0}', space=sflag, size = 0x4, scoped, tag = 'scoped memory for tpu_custom_call.1']
    #allocation4 [shape = 's32[1]{0}', space=sflag, size = 0x4, scoped, tag = 'scoped memory for tpu_custom_call.1']
    #allocation5 [shape = 'u8[32768]{0}', space=vmem, size = 0x8000, scoped, tag = 'input window, operand 1, single buffered']
    #allocation6 [shape = 's32[1]{0}', space=sflag, size = 0x4, scoped, tag = 'scoped memory for tpu_custom_call.1']
    #allocation7 [shape = 'u8[32768]{0}', space=vmem, size = 0x8000, scoped, tag = 'input window, operand 3, single buffered']
    #allocation8 [shape = 'u8[65536]{0}', space=vmem, size = 0x10000, scoped, tag = 'input window, operand 5, single buffered']
    #allocation9 [shape = 's32[1]{0}', space=sflag, size = 0x4, scoped, tag = 'scoped memory for tpu_custom_call.1']
    #allocation10 [shape = 'u8[8192]{0}', space=vmem, size = 0x2000, scoped, tag = 'output window, operand 0, single buffered']
    %13 = vsyncpa [#allocation3], 0
    %14 = vsyncpa [#allocation6], 0
    %15 = vsyncpa [#allocation9], 0
    %16 = vsyncpa [#allocation4], 0
    // Predicated region
    $region2: #{tpu_custom_call.1} parent=1 // pred_check
      _
    $region3: #{tpu_custom_call.1} parent=1 // pred_check_branch
      %18 = sbr.rel (0) target = $region5
    $region4: #{tpu_custom_call.1} parent=1 // pred_region
      %s20 = ssub.s32 64, 64
      %21 = vsyncadd [#allocation3], %s20
      %s23 = sshll.u32 [#allocation2], 4
      %s24 = int_to_ptr.vmem [resolvable:$true] %s23
      %26 = dma.hbm_to_vmem [thread:$0]  %s0, 64, %s24, [#allocation3]
    $region5: #{tpu_custom_call.1} parent=1 // pred_fallthru
      _
    // Predicated region
    $region6: #{tpu_custom_call.1} parent=1 // pred_check
      _
    $region7: #{tpu_custom_call.1} parent=1 // pred_check_branch
      %28 = sbr.rel (0) target = $region9
    $region8: #{tpu_custom_call.1} parent=1 // pred_region
      %s30 = ssub.s32 1024, 1024
      %31 = vsyncadd [#allocation6], %s30
      %s32 = sshll.u32 [#allocation5], 4
      %s33 = int_to_ptr.vmem [resolvable:$true] %s32
      %38 = dma.hbm_to_vmem [thread:$0]  %s1, 1024, %s33, [#allocation6], 64, 64, 4
    $region9: #{tpu_custom_call.1} parent=1 // pred_fallthru
      _
    // Predicated region
    $region10: #{tpu_custom_call.1} parent=1 // pred_check
      _
    $region11: #{tpu_custom_call.1} parent=1 // pred_check_branch
      %40 = sbr.rel (0) target = $region13
    $region12: #{tpu_custom_call.1} parent=1 // pred_region
      _
    $region13: #{tpu_custom_call.1} parent=1 // pred_fallthru
      _
    // Predicated region
    $region14: #{tpu_custom_call.1} parent=1 // pred_check
      _
    $region15: #{tpu_custom_call.1} parent=1 // pred_check_branch
      %42 = sbr.rel (0) target = $region17
    $region16: #{tpu_custom_call.1} parent=1 // pred_region
      %s44 = ssub.s32 1024, 1024
      %45 = vsyncadd [#allocation6], %s44
      %s46 = sshll.u32 [#allocation7], 4
      %s47 = int_to_ptr.vmem [resolvable:$true] %s46
      %52 = dma.hbm_to_vmem [thread:$0]  %s3, 1024, %s47, [#allocation6], 64, 64, 4
    $region17: #{tpu_custom_call.1} parent=1 // pred_fallthru
      _
    // Predicated region
    $region18: #{tpu_custom_call.1} parent=1 // pred_check
      _
    $region19: #{tpu_custom_call.1} parent=1 // pred_check_branch
      %54 = sbr.rel (0) target = $region21
    $region20: #{tpu_custom_call.1} parent=1 // pred_region
      _
    $region21: #{tpu_custom_call.1} parent=1 // pred_fallthru
      _
    // Predicated region
    $region22: #{tpu_custom_call.1} parent=1 // pred_check
      _
    $region23: #{tpu_custom_call.1} parent=1 // pred_check_branch
      %56 = sbr.rel (0) target = $region25
    $region24: #{tpu_custom_call.1} parent=1 // pred_region
      %s58 = ssub.s32 2048, 2048
      %59 = vsyncadd [#allocation9], %s58
      %s60 = sshll.u32 [#allocation8], 4
      %s61 = int_to_ptr.vmem [resolvable:$true] %s60
      %66 = dma.hbm_to_vmem [thread:$0]  %s5, 2048, %s61, [#allocation9], 128, 128, 8
    $region25: #{tpu_custom_call.1} parent=1 // pred_fallthru
      _
    // Predicated region
    $region26: #{tpu_custom_call.1} parent=1 // pred_check
      _
    $region27: #{tpu_custom_call.1} parent=1 // pred_check_branch
      %68 = sbr.rel (0) target = $region29
    $region28: #{tpu_custom_call.1} parent=1 // pred_region
      _
    $region29: #{tpu_custom_call.1} parent=1 // pred_fallthru
      _
    // Predicated region
    $region30: #{tpu_custom_call.1} parent=1 // pred_check
      _
    $region31: #{tpu_custom_call.1} parent=1 // pred_check_branch
      %70 = sbr.rel (0) target = $region33
    $region32: #{tpu_custom_call.1} parent=1 // pred_region
      _
    $region33: #{tpu_custom_call.1} parent=1 // pred_fallthru
      _
    // Predicated region
    $region34: #{tpu_custom_call.1} parent=1 // pred_check
      _
    $region35: #{tpu_custom_call.1} parent=1 // pred_check_branch
      %72 = sbr.rel (0) target = $region37
    $region36: #{tpu_custom_call.1} parent=1 // pred_region
      %73 = dma.done [#allocation3], 64
    $region37: #{tpu_custom_call.1} parent=1 // pred_fallthru
      _
    // Predicated region
    $region38: #{tpu_custom_call.1} parent=1 // pred_check
      _
    $region39: #{tpu_custom_call.1} parent=1 // pred_check_branch
      %75 = sbr.rel (0) target = $region41
    $region40: #{tpu_custom_call.1} parent=1 // pred_region
      %76 = dma.done [#allocation6], 1024
    $region41: #{tpu_custom_call.1} parent=1 // pred_fallthru
      _
    // Predicated region
    $region42: #{tpu_custom_call.1} parent=1 // pred_check
      _
    $region43: #{tpu_custom_call.1} parent=1 // pred_check_branch
      %78 = sbr.rel (0) target = $region45
    $region44: #{tpu_custom_call.1} parent=1 // pred_region
      %79 = dma.done [#allocation6], 1024
    $region45: #{tpu_custom_call.1} parent=1 // pred_fallthru
      _
    // Predicated region
    $region46: #{tpu_custom_call.1} parent=1 // pred_check
      _
    $region47: #{tpu_custom_call.1} parent=1 // pred_check_branch
      %81 = sbr.rel (0) target = $region49
    $region48: #{tpu_custom_call.1} parent=1 // pred_region
      %82 = dma.done [#allocation9], 2048
    $region49: #{tpu_custom_call.1} parent=1 // pred_fallthru
      _
    %v84 = vld [vmem:[#allocation2] sm:$0xf]
    %v85 = vld [vmem:[#allocation5] sm:$0xf]
    %v86 = vld [vmem:[#allocation5 + $0x4] sm:$0xf]
    %v87 = vld [vmem:[#allocation5 + $0x8] sm:$0xf]
    %v88 = vld [vmem:[#allocation5 + $0xc] sm:$0xf]
    %v89 = vld [vmem:[#allocation5 + $0x10] sm:$0xf]
    %v90 = vld [vmem:[#allocation5 + $0x14] sm:$0xf]
    %v91 = vld [vmem:[#allocation5 + $0x18] sm:$0xf]
    %v92 = vld [vmem:[#allocation5 + $0x1c] sm:$0xf]
    %v93 = vld [vmem:[#allocation5 + $0x20] sm:$0xf]
    %v94 = vld [vmem:[#allocation5 + $0x24] sm:$0xf]
    %v95 = vld [vmem:[#allocation5 + $0x28] sm:$0xf]
    %v96 = vld [vmem:[#allocation5 + $0x2c] sm:$0xf]
    %v97 = vld [vmem:[#allocation5 + $0x30] sm:$0xf]
    %v98 = vld [vmem:[#allocation5 + $0x34] sm:$0xf]
    %v99 = vld [vmem:[#allocation5 + $0x38] sm:$0xf]
    %v100 = vld [vmem:[#allocation5 + $0x3c] sm:$0xf]
    %v101 = vld [vmem:[%s2] sm:$0x1]
    %v103 = vlaneseq
    %v104 = vshrl.u32 %v103, 7
    %v105 = vsub.s32 0, %v104
    %v106 = vrot.slane %v101, %v105
    %v124 = vunpack.c.l.b16 %v85
    %v125 = vunpack.c.l.b16 %v86
    %v126 = vunpack.c.l.b16 %v87
    %v127 = vunpack.c.l.b16 %v88
    %v128 = vunpack.c.l.b16 %v89
    %v129 = vunpack.c.l.b16 %v90
    %v130 = vunpack.c.l.b16 %v91
    %v131 = vunpack.c.l.b16 %v92
    %v132 = vunpack.c.l.b16 %v93
    %v133 = vunpack.c.l.b16 %v94
    %v134 = vunpack.c.l.b16 %v95
    %v135 = vunpack.c.l.b16 %v96
    %v136 = vunpack.c.l.b16 %v97
    %v137 = vunpack.c.l.b16 %v98
    %v138 = vunpack.c.l.b16 %v99
    %v139 = vunpack.c.l.b16 %v100
    %v140 = vpack.c.b16 %v125, %v124
    %v141 = vpack.c.b16 %v127, %v126
    %v142 = vpack.c.b16 %v129, %v128
    %v143 = vpack.c.b16 %v131, %v130
    %v144 = vpack.c.b16 %v133, %v132
    %v145 = vpack.c.b16 %v135, %v134
    %v146 = vpack.c.b16 %v137, %v136
    %v147 = vpack.c.b16 %v139, %v138
    %156 = vmatprep.subr.bf16.mxu0 0
    %157 = vmatpush1.bf16.msra.mxu0 %v147
    %158 = vmatprep.subr.bf16.mxu0 0
    %159 = vmatpush1.bf16.msra.mxu0 %v146
    %160 = vmatprep.subr.bf16.mxu0 0
    %161 = vmatpush1.bf16.msra.mxu0 %v145
    %162 = vmatprep.subr.bf16.mxu0 0
    %163 = vmatpush1.bf16.msra.mxu0 %v144
    %164 = vmatprep.subr.bf16.mxu0 0
    %165 = vmatpush1.bf16.msra.mxu0 %v143
    %166 = vmatprep.subr.bf16.mxu0 0
    %167 = vmatpush1.bf16.msra.mxu0 %v142
    %168 = vmatprep.subr.bf16.mxu0 0
    %169 = vmatpush1.bf16.msra.mxu0 %v141
    %170 = vmatprep.subr.bf16.mxu0 0
    %171 = vmatpush1.bf16.msra.mxu0 %v140
    %172 = vmatprep.subr.bf16.mxu0 0
    %173 = vmatpush2.bf16.msra.mxu0 0
    %174 = vmatprep.subr.bf16.mxu0 0
    %175 = vmatpush2.bf16.msra.mxu0 0
    %176 = vmatprep.subr.bf16.mxu0 0
    %177 = vmatpush2.bf16.msra.mxu0 0
    %178 = vmatprep.subr.bf16.mxu0 0
    %179 = vmatpush2.bf16.msra.mxu0 0
    %180 = vmatprep.subr.bf16.mxu0 0
    %181 = vmatpush2.bf16.msra.mxu0 0
    %182 = vmatprep.subr.bf16.mxu0 0
    %183 = vmatpush2.bf16.msra.mxu0 0
    %184 = vmatprep.subr.bf16.mxu0 0
    %185 = vmatpush2.bf16.msra.mxu0 0
    %186 = vmatprep.subr.bf16.mxu0 0
    %187 = vmatpush2.bf16.msra.mxu0 0
    %188 = vmatprep.mubr.bf16.mxu0 0
    %189 = vmatmul.mubr.bf16.gmra.mxu0 %v84
    %v190 = vpop.f32.mrf.mxu0
    %v191 = vadd.f32 %v106, %v190
    %v192 = vpop.f32.mrf.mxu0
    %v193 = vpop.f32.mrf.mxu0
    %v194 = vpop.f32.mrf.mxu0
    %195 = vdwg.mxu0
    %v196 = vmul.f32 %v191, 0.01
    %v197 = vmax.f32 %v191, %v196
    %v198 = vpack.c.bf16 %v197, %v197
    %v199 = vld [vmem:[#allocation7] sm:$0xf]
    %v200 = vld [vmem:[#allocation7 + $0x4] sm:$0xf]
    %v201 = vld [vmem:[#allocation7 + $0x8] sm:$0xf]
    %v202 = vld [vmem:[#allocation7 + $0xc] sm:$0xf]
    %v203 = vld [vmem:[#allocation7 + $0x10] sm:$0xf]
    %v204 = vld [vmem:[#allocation7 + $0x14] sm:$0xf]
    %v205 = vld [vmem:[#allocation7 + $0x18] sm:$0xf]
    %v206 = vld [vmem:[#allocation7 + $0x1c] sm:$0xf]
    %v207 = vld [vmem:[#allocation7 + $0x20] sm:$0xf]
    %v208 = vld [vmem:[#allocation7 + $0x24] sm:$0xf]
    %v209 = vld [vmem:[#allocation7 + $0x28] sm:$0xf]
    %v210 = vld [vmem:[#allocation7 + $0x2c] sm:$0xf]
    %v211 = vld [vmem:[#allocation7 + $0x30] sm:$0xf]
    %v212 = vld [vmem:[#allocation7 + $0x34] sm:$0xf]
    %v213 = vld [vmem:[#allocation7 + $0x38] sm:$0xf]
    %v214 = vld [vmem:[#allocation7 + $0x3c] sm:$0xf]
    %v215 = vld [vmem:[%s4] sm:$0x1]
    %v217 = vlaneseq
    %v218 = vshrl.u32 %v217, 7
    %v219 = vsub.s32 0, %v218
    %v220 = vrot.slane %v215, %v219
    %v238 = vunpack.c.l.b16 %v199
    %v239 = vunpack.c.l.b16 %v200
    %v240 = vunpack.c.l.b16 %v201
    %v241 = vunpack.c.l.b16 %v202
    %v242 = vunpack.c.l.b16 %v203
    %v243 = vunpack.c.l.b16 %v204
    %v244 = vunpack.c.l.b16 %v205
    %v245 = vunpack.c.l.b16 %v206
    %v246 = vunpack.c.l.b16 %v207
    %v247 = vunpack.c.l.b16 %v208
    %v248 = vunpack.c.l.b16 %v209
    %v249 = vunpack.c.l.b16 %v210
    %v250 = vunpack.c.l.b16 %v211
    %v251 = vunpack.c.l.b16 %v212
    %v252 = vunpack.c.l.b16 %v213
    %v253 = vunpack.c.l.b16 %v214
    %v254 = vpack.c.b16 %v239, %v238
    %v255 = vpack.c.b16 %v241, %v240
    %v256 = vpack.c.b16 %v243, %v242
    %v257 = vpack.c.b16 %v245, %v244
    %v258 = vpack.c.b16 %v247, %v246
    %v259 = vpack.c.b16 %v249, %v248
    %v260 = vpack.c.b16 %v251, %v250
    %v261 = vpack.c.b16 %v253, %v252
    %270 = vmatprep.subr.bf16.mxu0 0
    %271 = vmatpush1.bf16.msra.mxu0 %v261
    %272 = vmatprep.subr.bf16.mxu0 0
    %273 = vmatpush1.bf16.msra.mxu0 %v260
    %274 = vmatprep.subr.bf16.mxu0 0
    %275 = vmatpush1.bf16.msra.mxu0 %v259
    %276 = vmatprep.subr.bf16.mxu0 0
    %277 = vmatpush1.bf16.msra.mxu0 %v258
    %278 = vmatprep.subr.bf16.mxu0 0
    %279 = vmatpush1.bf16.msra.mxu0 %v257
    %280 = vmatprep.subr.bf16.mxu0 0
    %281 = vmatpush1.bf16.msra.mxu0 %v256
    %282 = vmatprep.subr.bf16.mxu0 0
    %283 = vmatpush1.bf16.msra.mxu0 %v255
    %284 = vmatprep.subr.bf16.mxu0 0
    %285 = vmatpush1.bf16.msra.mxu0 %v254
    %286 = vmatprep.subr.bf16.mxu0 0
    %287 = vmatpush2.bf16.msra.mxu0 0
    %288 = vmatprep.subr.bf16.mxu0 0
    %289 = vmatpush2.bf16.msra.mxu0 0
    %290 = vmatprep.subr.bf16.mxu0 0
    %291 = vmatpush2.bf16.msra.mxu0 0
    %292 = vmatprep.subr.bf16.mxu0 0
    %293 = vmatpush2.bf16.msra.mxu0 0
    %294 = vmatprep.subr.bf16.mxu0 0
    %295 = vmatpush2.bf16.msra.mxu0 0
    %296 = vmatprep.subr.bf16.mxu0 0
    %297 = vmatpush2.bf16.msra.mxu0 0
    %298 = vmatprep.subr.bf16.mxu0 0
    %299 = vmatpush2.bf16.msra.mxu0 0
    %300 = vmatprep.subr.bf16.mxu0 0
    %301 = vmatpush2.bf16.msra.mxu0 0
    %302 = vmatprep.mubr.bf16.mxu0 0
    %303 = vmatmul.mubr.bf16.gmra.mxu0 %v198
    %v304 = vpop.f32.mrf.mxu0
    %v305 = vadd.f32 %v220, %v304
    %v306 = vpop.f32.mrf.mxu0
    %v307 = vpop.f32.mrf.mxu0
    %v308 = vpop.f32.mrf.mxu0
    %309 = vdwg.mxu0
    %v310 = vmul.f32 %v305, 0.01
    %v311 = vmax.f32 %v305, %v310
    %v312 = vpack.c.bf16 %v311, %v311
    %v313 = vld [vmem:[#allocation8] sm:$0xff]
    %v314 = vld [vmem:[#allocation8 + $0x8] sm:$0xff]
    %v315 = vld [vmem:[#allocation8 + $0x10] sm:$0xff]
    %v316 = vld [vmem:[#allocation8 + $0x18] sm:$0xff]
    %v317 = vld [vmem:[#allocation8 + $0x20] sm:$0xff]
    %v318 = vld [vmem:[#allocation8 + $0x28] sm:$0xff]
    %v319 = vld [vmem:[#allocation8 + $0x30] sm:$0xff]
    %v320 = vld [vmem:[#allocation8 + $0x38] sm:$0xff]
    %v321 = vld [vmem:[#allocation8 + $0x40] sm:$0xff]
    %v322 = vld [vmem:[#allocation8 + $0x48] sm:$0xff]
    %v323 = vld [vmem:[#allocation8 + $0x50] sm:$0xff]
    %v324 = vld [vmem:[#allocation8 + $0x58] sm:$0xff]
    %v325 = vld [vmem:[#allocation8 + $0x60] sm:$0xff]
    %v326 = vld [vmem:[#allocation8 + $0x68] sm:$0xff]
    %v327 = vld [vmem:[#allocation8 + $0x70] sm:$0xff]
    %v328 = vld [vmem:[#allocation8 + $0x78] sm:$0xff]
    %v329 = vld [vmem:[%s6] sm:$0x3]
    %v331 = vlaneseq
    %v332 = vshrl.u32 %v331, 7
    %v333 = vsub.s32 0, %v332
    %v334 = vrot.slane %v329, %v333
    %v335 = vlaneseq
    %v336 = vshrl.u32 %v335, 7
    %v337 = vsub.s32 1, %v336
    %v338 = vrot.slane %v329, %v337
    %v357 = vunpack.c.l.b16 %v313
    %v358 = vunpack.c.h.b16 %v313
    %v359 = vunpack.c.l.b16 %v314
    %v360 = vunpack.c.h.b16 %v314
    %v361 = vunpack.c.l.b16 %v315
    %v362 = vunpack.c.h.b16 %v315
    %v363 = vunpack.c.l.b16 %v316
    %v364 = vunpack.c.h.b16 %v316
    %v365 = vunpack.c.l.b16 %v317
    %v366 = vunpack.c.h.b16 %v317
    %v367 = vunpack.c.l.b16 %v318
    %v368 = vunpack.c.h.b16 %v318
    %v369 = vunpack.c.l.b16 %v319
    %v370 = vunpack.c.h.b16 %v319
    %v371 = vunpack.c.l.b16 %v320
    %v372 = vunpack.c.h.b16 %v320
    %v373 = vunpack.c.l.b16 %v321
    %v374 = vunpack.c.h.b16 %v321
    %v375 = vunpack.c.l.b16 %v322
    %v376 = vunpack.c.h.b16 %v322
    %v377 = vunpack.c.l.b16 %v323
    %v378 = vunpack.c.h.b16 %v323
    %v379 = vunpack.c.l.b16 %v324
    %v380 = vunpack.c.h.b16 %v324
    %v381 = vunpack.c.l.b16 %v325
    %v382 = vunpack.c.h.b16 %v325
    %v383 = vunpack.c.l.b16 %v326
    %v384 = vunpack.c.h.b16 %v326
    %v385 = vunpack.c.l.b16 %v327
    %v386 = vunpack.c.h.b16 %v327
    %v387 = vunpack.c.l.b16 %v328
    %v388 = vunpack.c.h.b16 %v328
    %v389 = vpack.c.b16 %v359, %v357
    %v390 = vpack.c.b16 %v360, %v358
    %v391 = vpack.c.b16 %v363, %v361
    %v392 = vpack.c.b16 %v364, %v362
    %v393 = vpack.c.b16 %v367, %v365
    %v394 = vpack.c.b16 %v368, %v366
    %v395 = vpack.c.b16 %v371, %v369
    %v396 = vpack.c.b16 %v372, %v370
    %v397 = vpack.c.b16 %v375, %v373
    %v398 = vpack.c.b16 %v376, %v374
    %v399 = vpack.c.b16 %v379, %v377
    %v400 = vpack.c.b16 %v380, %v378
    %v401 = vpack.c.b16 %v383, %v381
    %v402 = vpack.c.b16 %v384, %v382
    %v403 = vpack.c.b16 %v387, %v385
    %v404 = vpack.c.b16 %v388, %v386
    %421 = vmatprep.subr.bf16.mxu0 %v404
    %422 = vmatpush1.bf16.msra.mxu0 %v403
    %423 = vmatprep.subr.bf16.mxu0 %v402
    %424 = vmatpush1.bf16.msra.mxu0 %v401
    %425 = vmatprep.subr.bf16.mxu0 %v400
    %426 = vmatpush1.bf16.msra.mxu0 %v399
    %427 = vmatprep.subr.bf16.mxu0 %v398
    %428 = vmatpush1.bf16.msra.mxu0 %v397
    %429 = vmatprep.subr.bf16.mxu0 %v396
    %430 = vmatpush1.bf16.msra.mxu0 %v395
    %431 = vmatprep.subr.bf16.mxu0 %v394
    %432 = vmatpush1.bf16.msra.mxu0 %v393
    %433 = vmatprep.subr.bf16.mxu0 %v392
    %434 = vmatpush1.bf16.msra.mxu0 %v391
    %435 = vmatprep.subr.bf16.mxu0 %v390
    %436 = vmatpush1.bf16.msra.mxu0 %v389
    %437 = vmatprep.subr.bf16.mxu0 0
    %438 = vmatpush2.bf16.msra.mxu0 0
    %439 = vmatprep.subr.bf16.mxu0 0
    %440 = vmatpush2.bf16.msra.mxu0 0
    %441 = vmatprep.subr.bf16.mxu0 0
    %442 = vmatpush2.bf16.msra.mxu0 0
    %443 = vmatprep.subr.bf16.mxu0 0
    %444 = vmatpush2.bf16.msra.mxu0 0
    %445 = vmatprep.subr.bf16.mxu0 0
    %446 = vmatpush2.bf16.msra.mxu0 0
    %447 = vmatprep.subr.bf16.mxu0 0
    %448 = vmatpush2.bf16.msra.mxu0 0
    %449 = vmatprep.subr.bf16.mxu0 0
    %450 = vmatpush2.bf16.msra.mxu0 0
    %451 = vmatprep.subr.bf16.mxu0 0
    %452 = vmatpush2.bf16.msra.mxu0 0
    %453 = vmatprep.mubr.bf16.mxu0 0
    %454 = vmatmul.mubr.bf16.gmra.mxu0 %v312
    %v455 = vpop.f32.mrf.mxu0
    %v456 = vadd.f32 %v334, %v455
    %v457 = vpop.f32.mrf.mxu0
    %v458 = vadd.f32 %v338, %v457
    %v459 = vpop.f32.mrf.mxu0
    %v460 = vpop.f32.mrf.mxu0
    %461 = vdwg.mxu0
    %v462 = vld [vmem:[%s7] sm:$0xff]
    %v463 = vmul.f32 %v458, 0.5
    %v464 = vmul.f32 %v463, 1.442695
    %v465 = vpow.pop %v464
    %v466 = vmul.f32 %v465, %v462
    %v467 = vadd.f32 %v456, %v466
    %v468 = vadd.f32 %v458, 1.837877
    %v469 = vmul.f32 %v462, %v462
    %v470 = vadd.f32 %v468, %v469
    %v471 = vmul.f32 %v470, -0.5
    %472 = vst [vmem:[#allocation10] sm:$0xff] %v471
    %473 = vst [vmem:[#allocation10 + $0x8] sm:$0xff] %v467
    // Predicated region
    $region50: #{tpu_custom_call.1} parent=1 // pred_check
      _
    $region51: #{tpu_custom_call.1} parent=1 // pred_check_branch
      %475 = sbr.rel (0) target = $region53
    $region52: #{tpu_custom_call.1} parent=1 // pred_region
      %s477 = ssub.s32 256, 256
      %478 = vsyncadd [#allocation4], %s477
      %s480 = sshll.u32 [#allocation10], 4
      %s481 = int_to_ptr.vmem [resolvable:$true] %s480
      %483 = dma.vmem_to_hbm [thread:$0]  %s481, 256, %s8, [#allocation4]
    $region53: #{tpu_custom_call.1} parent=1 // pred_fallthru
      _
    // Predicated region
    $region54: #{tpu_custom_call.1} parent=1 // pred_check
      _
    $region55: #{tpu_custom_call.1} parent=1 // pred_check_branch
      %485 = sbr.rel (0) target = $region57
    $region56: #{tpu_custom_call.1} parent=1 // pred_region
      %486 = dma.done [#allocation4], 256
    $region57: #{tpu_custom_call.1} parent=1 // pred_fallthru
      _
    %487 = vsyncpa [#allocation3], 1
    %488 = vsyncpa [#allocation6], 1
    %489 = vsyncpa [#allocation9], 1
    %490 = vsyncpa [#allocation4], 1

// kernel: tpu_custom_call.1
$region0: #{tpu_custom_call.1}
  #allocation0 [shape = 'u32[]', space=smem, size = 0x4, offset = 0x4, fixed_abs, tag = 'smem constant byte address 0x4 - core index']
  #allocation1 [shape = 'u32[144,128]{1,0:T(1,128)}', space=vmem, size = 0x12000, scoped, tag = 'internal scratch']
  %s0 = inlined_call_operand.hbm [shape: bf16[8,128], index: 0, kind: input, shape index: {}]
  %s1 = inlined_call_operand.hbm [shape: bf16[128,128], index: 1, kind: input, shape index: {}]
  %s2 = inlined_call_operand.vmem [shape: f32[1,128], index: 2, kind: input, shape index: {}]
  %s3 = inlined_call_operand.hbm [shape: bf16[128,128], index: 3, kind: input, shape index: {}]
  %s4 = inlined_call_operand.vmem [shape: f32[1,128], index: 4, kind: input, shape index: {}]
  %s5 = inlined_call_operand.hbm [shape: bf16[128,256], index: 5, kind: input, shape index: {}]
  %s6 = inlined_call_operand.vmem [shape: f32[1,256], index: 6, kind: input, shape index: {}]
  %s7 = inlined_call_operand.vmem [shape: f32[8,128], index: 7, kind: input, shape index: {}]
  %s8 = inlined_call_operand.hbm [shape: f32[8,256], index: 8, kind: output, shape index: {}]
  %s9 = sld [smem:[#allocation0]]
  $region58: #{tpu_custom_call.1} parent=0
    _
  %s11 = ssub.s32 1, %s9
  %s12 = scalar_select 0, %s11, %s9
  $region1: #{tpu_custom_call.1} parent=0
    #allocation2 [shape = 'u8[2048]{0}', space=vmem, size = 0x800, scoped, tag = 'input window, operand 0, single buffered']
    #allocation3 [shape = 's32[1]{0}', space=sflag, size = 0x4, scoped, tag = 'scoped memory for tpu_custom_call.1']
    #allocation4 [shape = 's32[1]{0}', space=sflag, size = 0x4, scoped, tag = 'scoped memory for tpu_custom_call.1']
    #allocation5 [shape = 'u8[32768]{0}', space=vmem, size = 0x8000, scoped, tag = 'input window, operand 1, single buffered']
    #allocation6 [shape = 's32[1]{0}', space=sflag, size = 0x4, scoped, tag = 'scoped memory for tpu_custom_call.1']
    #allocation7 [shape = 'u8[32768]{0}', space=vmem, size = 0x8000, scoped, tag = 'input window, operand 3, single buffered']
    #allocation8 [shape = 'u8[65536]{0}', space=vmem, size = 0x10000, scoped, tag = 'input window, operand 5, single buffered']
    #allocation9 [shape = 's32[1]{0}', space=sflag, size = 0x4, scoped, tag = 'scoped memory for tpu_custom_call.1']
    #allocation10 [shape = 'u8[8192]{0}', space=vmem, size = 0x2000, scoped, tag = 'output window, operand 0, single buffered']
    %13 = vsyncpa [#allocation3], 0
    %14 = vsyncpa [#allocation6], 0
    %15 = vsyncpa [#allocation9], 0
    %16 = vsyncpa [#allocation4], 0
    // Predicated region
    $region2: #{tpu_custom_call.1} parent=1 // pred_check
      _
    $region3: #{tpu_custom_call.1} parent=1 // pred_check_branch
      %18 = sbr.rel (0) target = $region5
    $region4: #{tpu_custom_call.1} parent=1 // pred_region
      %s20 = ssub.s32 64, 64
      %21 = vsyncadd [#allocation3], %s20
      %s23 = sshll.u32 [#allocation2], 4
      %s24 = int_to_ptr.vmem [resolvable:$true] %s23
      %26 = dma.hbm_to_vmem [thread:$0]  %s0, 64, %s24, [#allocation3]
    $region5: #{tpu_custom_call.1} parent=1 // pred_fallthru
      _
    // Predicated region
    $region6: #{tpu_custom_call.1} parent=1 // pred_check
      _
    $region7: #{tpu_custom_call.1} parent=1 // pred_check_branch
      %28 = sbr.rel (0) target = $region9
    $region8: #{tpu_custom_call.1} parent=1 // pred_region
      %s30 = ssub.s32 1024, 1024
      %31 = vsyncadd [#allocation6], %s30
      %s32 = sshll.u32 [#allocation5], 4
      %s33 = int_to_ptr.vmem [resolvable:$true] %s32
      %38 = dma.hbm_to_vmem [thread:$0]  %s1, 1024, %s33, [#allocation6], 64, 64, 4
    $region9: #{tpu_custom_call.1} parent=1 // pred_fallthru
      _
    // Predicated region
    $region10: #{tpu_custom_call.1} parent=1 // pred_check
      _
    $region11: #{tpu_custom_call.1} parent=1 // pred_check_branch
      %40 = sbr.rel (0) target = $region13
    $region12: #{tpu_custom_call.1} parent=1 // pred_region
      _
    $region13: #{tpu_custom_call.1} parent=1 // pred_fallthru
      _
    // Predicated region
    $region14: #{tpu_custom_call.1} parent=1 // pred_check
      _
    $region15: #{tpu_custom_call.1} parent=1 // pred_check_branch
      %42 = sbr.rel (0) target = $region17
    $region16: #{tpu_custom_call.1} parent=1 // pred_region
      %s44 = ssub.s32 1024, 1024
      %45 = vsyncadd [#allocation6], %s44
      %s46 = sshll.u32 [#allocation7], 4
      %s47 = int_to_ptr.vmem [resolvable:$true] %s46
      %52 = dma.hbm_to_vmem [thread:$0]  %s3, 1024, %s47, [#allocation6], 64, 64, 4
    $region17: #{tpu_custom_call.1} parent=1 // pred_fallthru
      _
    // Predicated region
    $region18: #{tpu_custom_call.1} parent=1 // pred_check
      _
    $region19: #{tpu_custom_call.1} parent=1 // pred_check_branch
      %54 = sbr.rel (0) target = $region21
    $region20: #{tpu_custom_call.1} parent=1 // pred_region
      _
    $region21: #{tpu_custom_call.1} parent=1 // pred_fallthru
      _
    // Predicated region
    $region22: #{tpu_custom_call.1} parent=1 // pred_check
      _
    $region23: #{tpu_custom_call.1} parent=1 // pred_check_branch
      %56 = sbr.rel (0) target = $region25
    $region24: #{tpu_custom_call.1} parent=1 // pred_region
      %s58 = ssub.s32 2048, 2048
      %59 = vsyncadd [#allocation9], %s58
      %s60 = sshll.u32 [#allocation8], 4
      %s61 = int_to_ptr.vmem [resolvable:$true] %s60
      %66 = dma.hbm_to_vmem [thread:$0]  %s5, 2048, %s61, [#allocation9], 128, 128, 8
    $region25: #{tpu_custom_call.1} parent=1 // pred_fallthru
      _
    // Predicated region
    $region26: #{tpu_custom_call.1} parent=1 // pred_check
      _
    $region27: #{tpu_custom_call.1} parent=1 // pred_check_branch
      %68 = sbr.rel (0) target = $region29
    $region28: #{tpu_custom_call.1} parent=1 // pred_region
      _
    $region29: #{tpu_custom_call.1} parent=1 // pred_fallthru
      _
    // Predicated region
    $region30: #{tpu_custom_call.1} parent=1 // pred_check
      _
    $region31: #{tpu_custom_call.1} parent=1 // pred_check_branch
      %70 = sbr.rel (0) target = $region33
    $region32: #{tpu_custom_call.1} parent=1 // pred_region
      _
    $region33: #{tpu_custom_call.1} parent=1 // pred_fallthru
      _
    // Predicated region
    $region34: #{tpu_custom_call.1} parent=1 // pred_check
      _
    $region35: #{tpu_custom_call.1} parent=1 // pred_check_branch
      %72 = sbr.rel (0) target = $region37
    $region36: #{tpu_custom_call.1} parent=1 // pred_region
      %73 = dma.done [#allocation3], 64
    $region37: #{tpu_custom_call.1} parent=1 // pred_fallthru
      _
    // Predicated region
    $region38: #{tpu_custom_call.1} parent=1 // pred_check
      _
    $region39: #{tpu_custom_call.1} parent=1 // pred_check_branch
      %75 = sbr.rel (0) target = $region41
    $region40: #{tpu_custom_call.1} parent=1 // pred_region
      %76 = dma.done [#allocation6], 1024
    $region41: #{tpu_custom_call.1} parent=1 // pred_fallthru
      _
    // Predicated region
    $region42: #{tpu_custom_call.1} parent=1 // pred_check
      _
    $region43: #{tpu_custom_call.1} parent=1 // pred_check_branch
      %78 = sbr.rel (0) target = $region45
    $region44: #{tpu_custom_call.1} parent=1 // pred_region
      %79 = dma.done [#allocation6], 1024
    $region45: #{tpu_custom_call.1} parent=1 // pred_fallthru
      _
    // Predicated region
    $region46: #{tpu_custom_call.1} parent=1 // pred_check
      _
    $region47: #{tpu_custom_call.1} parent=1 // pred_check_branch
      %81 = sbr.rel (0) target = $region49
    $region48: #{tpu_custom_call.1} parent=1 // pred_region
      %82 = dma.done [#allocation9], 2048
    $region49: #{tpu_custom_call.1} parent=1 // pred_fallthru
      _
    %v84 = vld [vmem:[#allocation2] sm:$0xf]
    %v85 = vld [vmem:[#allocation5] sm:$0xf]
    %v86 = vld [vmem:[#allocation5 + $0x4] sm:$0xf]
    %v87 = vld [vmem:[#allocation5 + $0x8] sm:$0xf]
    %v88 = vld [vmem:[#allocation5 + $0xc] sm:$0xf]
    %v89 = vld [vmem:[#allocation5 + $0x10] sm:$0xf]
    %v90 = vld [vmem:[#allocation5 + $0x14] sm:$0xf]
    %v91 = vld [vmem:[#allocation5 + $0x18] sm:$0xf]
    %v92 = vld [vmem:[#allocation5 + $0x1c] sm:$0xf]
    %v93 = vld [vmem:[#allocation5 + $0x20] sm:$0xf]
    %v94 = vld [vmem:[#allocation5 + $0x24] sm:$0xf]
    %v95 = vld [vmem:[#allocation5 + $0x28] sm:$0xf]
    %v96 = vld [vmem:[#allocation5 + $0x2c] sm:$0xf]
    %v97 = vld [vmem:[#allocation5 + $0x30] sm:$0xf]
    %v98 = vld [vmem:[#allocation5 + $0x34] sm:$0xf]
    %v99 = vld [vmem:[#allocation5 + $0x38] sm:$0xf]
    %v100 = vld [vmem:[#allocation5 + $0x3c] sm:$0xf]
    %v101 = vld [vmem:[%s2] sm:$0x1]
    %v103 = vlaneseq
    %v104 = vshrl.u32 %v103, 7
    %v105 = vsub.s32 0, %v104
    %v106 = vrot.slane %v101, %v105
    %v124 = vunpack.c.l.b16 %v85
    %v125 = vunpack.c.l.b16 %v86
    %v126 = vunpack.c.l.b16 %v87
    %v127 = vunpack.c.l.b16 %v88
    %v128 = vunpack.c.l.b16 %v89
    %v129 = vunpack.c.l.b16 %v90
    %v130 = vunpack.c.l.b16 %v91
    %v131 = vunpack.c.l.b16 %v92
    %v132 = vunpack.c.l.b16 %v93
    %v133 = vunpack.c.l.b16 %v94
    %v134 = vunpack.c.l.b16 %v95
    %v135 = vunpack.c.l.b16 %v96
    %v136 = vunpack.c.l.b16 %v97
    %v137 = vunpack.c.l.b16 %v98
    %v138 = vunpack.c.l.b16 %v99
    %v139 = vunpack.c.l.b16 %v100
    %v140 = vpack.c.b16 %v125, %v124
    %v141 = vpack.c.b16 %v127, %v126
    %v142 = vpack.c.b16 %v129, %v128
    %v143 = vpack.c.b16 %v131, %v130
    %v144 = vpack.c.b16 %v133, %v132
    %v145 = vpack.c.b16 %v135, %v134
    %v146 = vpack.c.b16 %v137, %v136
    %v147 = vpack.c.b16 %v139, %v138
    %156 = vmatprep.subr.bf16.mxu0 0
    %157 = vmatpush1.bf16.msra.mxu0 %v147
    %158 = vmatprep.subr.bf16.mxu0 0
    %159 = vmatpush1.bf16.msra.mxu0 %v146
    %160 = vmatprep.subr.bf16.mxu0 0
    %161 = vmatpush1.bf16.msra.mxu0 %v145
    %162 = vmatprep.subr.bf16.mxu0 0
    %163 = vmatpush1.bf16.msra.mxu0 %v144
    %164 = vmatprep.subr.bf16.mxu0 0
    %165 = vmatpush1.bf16.msra.mxu0 %v143
    %166 = vmatprep.subr.bf16.mxu0 0
    %167 = vmatpush1.bf16.msra.mxu0 %v142
    %168 = vmatprep.subr.bf16.mxu0 0
    %169 = vmatpush1.bf16.msra.mxu0 %v141
    %170 = vmatprep.subr.bf16.mxu0 0
    %171 = vmatpush1.bf16.msra.mxu0 %v140
    %172 = vmatprep.subr.bf16.mxu0 0
    %173 = vmatpush2.bf16.msra.mxu0 0
    %174 = vmatprep.subr.bf16.mxu0 0
    %175 = vmatpush2.bf16.msra.mxu0 0
    %176 = vmatprep.subr.bf16.mxu0 0
    %177 = vmatpush2.bf16.msra.mxu0 0
    %178 = vmatprep.subr.bf16.mxu0 0
    %179 = vmatpush2.bf16.msra.mxu0 0
    %180 = vmatprep.subr.bf16.mxu0 0
    %181 = vmatpush2.bf16.msra.mxu0 0
    %182 = vmatprep.subr.bf16.mxu0 0
    %183 = vmatpush2.bf16.msra.mxu0 0
    %184 = vmatprep.subr.bf16.mxu0 0
    %185 = vmatpush2.bf16.msra.mxu0 0
    %186 = vmatprep.subr.bf16.mxu0 0
    %187 = vmatpush2.bf16.msra.mxu0 0
    %188 = vmatprep.mubr.bf16.mxu0 0
    %189 = vmatmul.mubr.bf16.gmra.mxu0 %v84
    %v190 = vpop.f32.mrf.mxu0
    %v191 = vadd.f32 %v106, %v190
    %v192 = vpop.f32.mrf.mxu0
    %v193 = vpop.f32.mrf.mxu0
    %v194 = vpop.f32.mrf.mxu0
    %195 = vdwg.mxu0
    %v196 = vmul.f32 %v191, 0.01
    %v197 = vmax.f32 %v191, %v196
    %v198 = vpack.c.bf16 %v197, %v197
    %v199 = vld [vmem:[#allocation7] sm:$0xf]
    %v200 = vld [vmem:[#allocation7 + $0x4] sm:$0xf]
    %v201 = vld [vmem:[#allocation7 + $0x8] sm:$0xf]
    %v202 = vld [vmem:[#allocation7 + $0xc] sm:$0xf]
    %v203 = vld [vmem:[#allocation7 + $0x10] sm:$0xf]
    %v204 = vld [vmem:[#allocation7 + $0x14] sm:$0xf]
    %v205 = vld [vmem:[#allocation7 + $0x18] sm:$0xf]
    %v206 = vld [vmem:[#allocation7 + $0x1c] sm:$0xf]
    %v207 = vld [vmem:[#allocation7 + $0x20] sm:$0xf]
    %v208 = vld [vmem:[#allocation7 + $0x24] sm:$0xf]
    %v209 = vld [vmem:[#allocation7 + $0x28] sm:$0xf]
    %v210 = vld [vmem:[#allocation7 + $0x2c] sm:$0xf]
    %v211 = vld [vmem:[#allocation7 + $0x30] sm:$0xf]
    %v212 = vld [vmem:[#allocation7 + $0x34] sm:$0xf]
    %v213 = vld [vmem:[#allocation7 + $0x38] sm:$0xf]
    %v214 = vld [vmem:[#allocation7 + $0x3c] sm:$0xf]
    %v215 = vld [vmem:[%s4] sm:$0x1]
    %v217 = vlaneseq
    %v218 = vshrl.u32 %v217, 7
    %v219 = vsub.s32 0, %v218
    %v220 = vrot.slane %v215, %v219
    %v238 = vunpack.c.l.b16 %v199
    %v239 = vunpack.c.l.b16 %v200
    %v240 = vunpack.c.l.b16 %v201
    %v241 = vunpack.c.l.b16 %v202
    %v242 = vunpack.c.l.b16 %v203
    %v243 = vunpack.c.l.b16 %v204
    %v244 = vunpack.c.l.b16 %v205
    %v245 = vunpack.c.l.b16 %v206
    %v246 = vunpack.c.l.b16 %v207
    %v247 = vunpack.c.l.b16 %v208
    %v248 = vunpack.c.l.b16 %v209
    %v249 = vunpack.c.l.b16 %v210
    %v250 = vunpack.c.l.b16 %v211
    %v251 = vunpack.c.l.b16 %v212
    %v252 = vunpack.c.l.b16 %v213
    %v253 = vunpack.c.l.b16 %v214
    %v254 = vpack.c.b16 %v239, %v238
    %v255 = vpack.c.b16 %v241, %v240
    %v256 = vpack.c.b16 %v243, %v242
    %v257 = vpack.c.b16 %v245, %v244
    %v258 = vpack.c.b16 %v247, %v246
    %v259 = vpack.c.b16 %v249, %v248
    %v260 = vpack.c.b16 %v251, %v250
    %v261 = vpack.c.b16 %v253, %v252
    %270 = vmatprep.subr.bf16.mxu0 0
    %271 = vmatpush1.bf16.msra.mxu0 %v261
    %272 = vmatprep.subr.bf16.mxu0 0
    %273 = vmatpush1.bf16.msra.mxu0 %v260
    %274 = vmatprep.subr.bf16.mxu0 0
    %275 = vmatpush1.bf16.msra.mxu0 %v259
    %276 = vmatprep.subr.bf16.mxu0 0
    %277 = vmatpush1.bf16.msra.mxu0 %v258
    %278 = vmatprep.subr.bf16.mxu0 0
    %279 = vmatpush1.bf16.msra.mxu0 %v257
    %280 = vmatprep.subr.bf16.mxu0 0
    %281 = vmatpush1.bf16.msra.mxu0 %v256
    %282 = vmatprep.subr.bf16.mxu0 0
    %283 = vmatpush1.bf16.msra.mxu0 %v255
    %284 = vmatprep.subr.bf16.mxu0 0
    %285 = vmatpush1.bf16.msra.mxu0 %v254
    %286 = vmatprep.subr.bf16.mxu0 0
    %287 = vmatpush2.bf16.msra.mxu0 0
    %288 = vmatprep.subr.bf16.mxu0 0
    %289 = vmatpush2.bf16.msra.mxu0 0
    %290 = vmatprep.subr.bf16.mxu0 0
    %291 = vmatpush2.bf16.msra.mxu0 0
    %292 = vmatprep.subr.bf16.mxu0 0
    %293 = vmatpush2.bf16.msra.mxu0 0
    %294 = vmatprep.subr.bf16.mxu0 0
    %295 = vmatpush2.bf16.msra.mxu0 0
    %296 = vmatprep.subr.bf16.mxu0 0
    %297 = vmatpush2.bf16.msra.mxu0 0
    %298 = vmatprep.subr.bf16.mxu0 0
    %299 = vmatpush2.bf16.msra.mxu0 0
    %300 = vmatprep.subr.bf16.mxu0 0
    %301 = vmatpush2.bf16.msra.mxu0 0
    %302 = vmatprep.mubr.bf16.mxu0 0
    %303 = vmatmul.mubr.bf16.gmra.mxu0 %v198
    %v304 = vpop.f32.mrf.mxu0
    %v305 = vadd.f32 %v220, %v304
    %v306 = vpop.f32.mrf.mxu0
    %v307 = vpop.f32.mrf.mxu0
    %v308 = vpop.f32.mrf.mxu0
    %309 = vdwg.mxu0
    %v310 = vmul.f32 %v305, 0.01
    %v311 = vmax.f32 %v305, %v310
    %v312 = vpack.c.bf16 %v311, %v311
    %v313 = vld [vmem:[#allocation8] sm:$0xff]
    %v314 = vld [vmem:[#allocation8 + $0x8] sm:$0xff]
    %v315 = vld [vmem:[#allocation8 + $0x10] sm:$0xff]
    %v316 = vld [vmem:[#allocation8 + $0x18] sm:$0xff]
    %v317 = vld [vmem:[#allocation8 + $0x20] sm:$0xff]
    %v318 = vld [vmem:[#allocation8 + $0x28] sm:$0xff]
    %v319 = vld [vmem:[#allocation8 + $0x30] sm:$0xff]
    %v320 = vld [vmem:[#allocation8 + $0x38] sm:$0xff]
    %v321 = vld [vmem:[#allocation8 + $0x40] sm:$0xff]
    %v322 = vld [vmem:[#allocation8 + $0x48] sm:$0xff]
    %v323 = vld [vmem:[#allocation8 + $0x50] sm:$0xff]
    %v324 = vld [vmem:[#allocation8 + $0x58] sm:$0xff]
    %v325 = vld [vmem:[#allocation8 + $0x60] sm:$0xff]
    %v326 = vld [vmem:[#allocation8 + $0x68] sm:$0xff]
    %v327 = vld [vmem:[#allocation8 + $0x70] sm:$0xff]
    %v328 = vld [vmem:[#allocation8 + $0x78] sm:$0xff]
    %v329 = vld [vmem:[%s6] sm:$0x3]
    %v331 = vlaneseq
    %v332 = vshrl.u32 %v331, 7
    %v333 = vsub.s32 0, %v332
    %v334 = vrot.slane %v329, %v333
    %v335 = vlaneseq
    %v336 = vshrl.u32 %v335, 7
    %v337 = vsub.s32 1, %v336
    %v338 = vrot.slane %v329, %v337
    %v357 = vunpack.c.l.b16 %v313
    %v358 = vunpack.c.h.b16 %v313
    %v359 = vunpack.c.l.b16 %v314
    %v360 = vunpack.c.h.b16 %v314
    %v361 = vunpack.c.l.b16 %v315
    %v362 = vunpack.c.h.b16 %v315
    %v363 = vunpack.c.l.b16 %v316
    %v364 = vunpack.c.h.b16 %v316
    %v365 = vunpack.c.l.b16 %v317
    %v366 = vunpack.c.h.b16 %v317
    %v367 = vunpack.c.l.b16 %v318
    %v368 = vunpack.c.h.b16 %v318
    %v369 = vunpack.c.l.b16 %v319
    %v370 = vunpack.c.h.b16 %v319
    %v371 = vunpack.c.l.b16 %v320
    %v372 = vunpack.c.h.b16 %v320
    %v373 = vunpack.c.l.b16 %v321
    %v374 = vunpack.c.h.b16 %v321
    %v375 = vunpack.c.l.b16 %v322
    %v376 = vunpack.c.h.b16 %v322
    %v377 = vunpack.c.l.b16 %v323
    %v378 = vunpack.c.h.b16 %v323
    %v379 = vunpack.c.l.b16 %v324
    %v380 = vunpack.c.h.b16 %v324
    %v381 = vunpack.c.l.b16 %v325
    %v382 = vunpack.c.h.b16 %v325
    %v383 = vunpack.c.l.b16 %v326
    %v384 = vunpack.c.h.b16 %v326
    %v385 = vunpack.c.l.b16 %v327
    %v386 = vunpack.c.h.b16 %v327
    %v387 = vunpack.c.l.b16 %v328
    %v388 = vunpack.c.h.b16 %v328
    %v389 = vpack.c.b16 %v359, %v357
    %v390 = vpack.c.b16 %v360, %v358
    %v391 = vpack.c.b16 %v363, %v361
    %v392 = vpack.c.b16 %v364, %v362
    %v393 = vpack.c.b16 %v367, %v365
    %v394 = vpack.c.b16 %v368, %v366
    %v395 = vpack.c.b16 %v371, %v369
    %v396 = vpack.c.b16 %v372, %v370
    %v397 = vpack.c.b16 %v375, %v373
    %v398 = vpack.c.b16 %v376, %v374
    %v399 = vpack.c.b16 %v379, %v377
    %v400 = vpack.c.b16 %v380, %v378
    %v401 = vpack.c.b16 %v383, %v381
    %v402 = vpack.c.b16 %v384, %v382
    %v403 = vpack.c.b16 %v387, %v385
    %v404 = vpack.c.b16 %v388, %v386
    %421 = vmatprep.subr.bf16.mxu0 %v404
    %422 = vmatpush1.bf16.msra.mxu0 %v403
    %423 = vmatprep.subr.bf16.mxu0 %v402
    %424 = vmatpush1.bf16.msra.mxu0 %v401
    %425 = vmatprep.subr.bf16.mxu0 %v400
    %426 = vmatpush1.bf16.msra.mxu0 %v399
    %427 = vmatprep.subr.bf16.mxu0 %v398
    %428 = vmatpush1.bf16.msra.mxu0 %v397
    %429 = vmatprep.subr.bf16.mxu0 %v396
    %430 = vmatpush1.bf16.msra.mxu0 %v395
    %431 = vmatprep.subr.bf16.mxu0 %v394
    %432 = vmatpush1.bf16.msra.mxu0 %v393
    %433 = vmatprep.subr.bf16.mxu0 %v392
    %434 = vmatpush1.bf16.msra.mxu0 %v391
    %435 = vmatprep.subr.bf16.mxu0 %v390
    %436 = vmatpush1.bf16.msra.mxu0 %v389
    %437 = vmatprep.subr.bf16.mxu0 0
    %438 = vmatpush2.bf16.msra.mxu0 0
    %439 = vmatprep.subr.bf16.mxu0 0
    %440 = vmatpush2.bf16.msra.mxu0 0
    %441 = vmatprep.subr.bf16.mxu0 0
    %442 = vmatpush2.bf16.msra.mxu0 0
    %443 = vmatprep.subr.bf16.mxu0 0
    %444 = vmatpush2.bf16.msra.mxu0 0
    %445 = vmatprep.subr.bf16.mxu0 0
    %446 = vmatpush2.bf16.msra.mxu0 0
    %447 = vmatprep.subr.bf16.mxu0 0
    %448 = vmatpush2.bf16.msra.mxu0 0
    %449 = vmatprep.subr.bf16.mxu0 0
    %450 = vmatpush2.bf16.msra.mxu0 0
    %451 = vmatprep.subr.bf16.mxu0 0
    %452 = vmatpush2.bf16.msra.mxu0 0
    %453 = vmatprep.mubr.bf16.mxu0 0
    %454 = vmatmul.mubr.bf16.gmra.mxu0 %v312
    %v455 = vpop.f32.mrf.mxu0
    %v456 = vadd.f32 %v334, %v455
    %v457 = vpop.f32.mrf.mxu0
    %v458 = vadd.f32 %v338, %v457
    %v459 = vpop.f32.mrf.mxu0
    %v460 = vpop.f32.mrf.mxu0
    %461 = vdwg.mxu0
    %v462 = vld [vmem:[%s7] sm:$0xff]
    %v463 = vmul.f32 %v458, 0.5
    %v464 = vmul.f32 %v463, 1.442695
    %v465 = vpow.pop %v464
    %v466 = vmul.f32 %v465, %v462
    %v467 = vadd.f32 %v456, %v466
    %v468 = vadd.f32 %v458, 1.837877
    %v469 = vmul.f32 %v462, %v462
    %v470 = vadd.f32 %v468, %v469
    %v471 = vmul.f32 %v470, -0.5
    %472 = vst [vmem:[#allocation10] sm:$0xff] %v471
    %473 = vst [vmem:[#allocation10 + $0x8] sm:$0xff] %v467
    // Predicated region
    $region50: #{tpu_custom_call.1} parent=1 // pred_check
      _
    $region51: #{tpu_custom_call.1} parent=1 // pred_check_branch
      %475 = sbr.rel (0) target = $region53
    $region52: #{tpu_custom_call.1} parent=1 // pred_region
      %s477 = ssub.s32 256, 256
      %478 = vsyncadd [#allocation4], %s477
      %s480 = sshll.u32 [#allocation10], 4
      %s481 = int_to_ptr.vmem [resolvable:$true] %s480
      %483 = dma.vmem_to_hbm [thread:$0]  %s481, 256, %s8, [#allocation4]
    $region53: #{tpu_custom_call.1} parent=1 // pred_fallthru
      _
    // Predicated region
    $region54: #{tpu_custom_call.1} parent=1 // pred_check
      _
    $region55: #{tpu_custom_call.1} parent=1 // pred_check_branch
      %485 = sbr.rel (0) target = $region57
    $region56: #{tpu_custom_call.1} parent=1 // pred_region
      %486 = dma.done [#allocation4], 256
    $region57: #{tpu_custom_call.1} parent=1 // pred_fallthru
      _
    %487 = vsyncpa [#allocation3], 1
    %488 = vsyncpa [#allocation6], 1
    %489 = vsyncpa [#allocation9], 1
    %490 = vsyncpa [#allocation4], 1

</llo_original>
